<compile_context>
chip_gen: v5e
topology: v5e:2x2
jax: 0.10.0
libtpu: 0.0.40
codegen_flags: <defaults>
</compile_context>

<pallas_src>
import functools

import jax
import jax.numpy as jnp
from jax.experimental import pallas as pl
from jax.experimental.pallas import tpu as pltpu


def _round_up(x, m):
    return (x + m - 1) // m * m


def _disc_kernel(u_ref, pos_ref, neg_ref, logsum_ref, sqsum_ref,
                 acc_log_ref, acc_sq_ref, *, total_b, tile_b, tiles_per_core):
    c = pl.program_id(0)   # core ("parallel") axis
    t = pl.program_id(1)   # reduction ("arbitrary") axis

    @pl.when(t == 0)
    def _init():
        acc_log_ref[...] = jnp.zeros_like(acc_log_ref)
        acc_sq_ref[...] = jnp.zeros_like(acc_sq_ref)

    u = u_ref[...].astype(jnp.float32)      # (tile_b, E)
    p = pos_ref[...].astype(jnp.float32)    # (tile_b, E)
    n = neg_ref[...].astype(jnp.float32)    # (tile_b, E)

    pos_score = jnp.sum(p * u, axis=1, keepdims=True)   # (tile_b, 1)
    neg_score = jnp.sum(n * u, axis=1, keepdims=True)   # (tile_b, 1)
    diff = pos_score - neg_score

    # Stable log(sigmoid(x)) = min(x, 0) - log(1 + exp(-|x|)); never produces -inf.
    logsig = jnp.minimum(diff, 0.0) - jnp.log(1.0 + jnp.exp(-jnp.abs(diff)))

    # Mask rows beyond the real batch (zero-padded rows): their squares are already 0,
    # but logsig(0) = -log(2) would otherwise pollute the sum.
    tile_start = (c * tiles_per_core + t) * tile_b
    row = jax.lax.broadcasted_iota(jnp.int32, (tile_b, 1), 0) + tile_start
    logsig = jnp.where(row < total_b, logsig, 0.0)

    # Pure VPU accumulation; no per-step cross-lane reductions into scalars.
    acc_log_ref[...] += logsig
    acc_sq_ref[...] += u * u + p * p + n * n

    @pl.when(t == tiles_per_core - 1)
    def _finalize():
        logsum_ref[...] = jnp.sum(acc_log_ref[...], keepdims=True).reshape(1, 1, 1)
        sqsum_ref[...] = jnp.sum(acc_sq_ref[...], keepdims=True).reshape(1, 1, 1)


def discriminator_forward(user_embedding, item_embedding, user, pos, neg, regs,
                          *, tile_b=1024, num_cores=2,
                          vmem_budget_bytes=40 * 1024 * 1024):
    """Returns (bpr_loss, reg_loss) as scalar float32 arrays."""
    # Glue: embedding gather in plain JAX (see TODO above about fusing it).
    u_e = user_embedding[user].astype(jnp.float32)      # (B, E)
    pos_e = item_embedding[pos].astype(jnp.float32)     # (B, E)
    neg_e = item_embedding[neg].astype(jnp.float32)     # (B, E)
    B, E = u_e.shape

    # Tile sizing: multiple of 8 sublanes, no bigger than the per-core share of B,
    # and small enough that 3 double-buffered input tiles + scratch fit the VMEM budget
    # (budget chosen to be safe on v7x's 64 MiB physical VMEM, with headroom).
    tile_b = max(8, min(_round_up(int(tile_b), 8),
                        _round_up(pl.cdiv(B, num_cores), 8)))

    def _vmem_needed(tb):
        io = 3 * 2 * tb * E * 4            # 3 inputs x 2 pipeline buffers
        scratch = tb * E * 4 + tb * 4      # acc_sq + acc_log
        return io + scratch + (1 << 16)    # margin for outputs / misc

    while tile_b > 8 and _vmem_needed(tile_b) > vmem_budget_bytes:
        tile_b = max(8, _round_up(tile_b // 2, 8))

    tiles_total = pl.cdiv(B, tile_b)
    tiles_per_core = pl.cdiv(tiles_total, num_cores)
    b_padded = num_cores * tiles_per_core * tile_b
    if b_padded != B:
        pad = b_padded - B
        u_e = jnp.pad(u_e, ((0, pad), (0, 0)))
        pos_e = jnp.pad(pos_e, ((0, pad), (0, 0)))
        neg_e = jnp.pad(neg_e, ((0, pad), (0, 0)))

    kernel = functools.partial(_disc_kernel, total_b=B, tile_b=tile_b,
                               tiles_per_core=tiles_per_core)

    emb_spec = pl.BlockSpec((tile_b, E), lambda c, t: (c * tiles_per_core + t, 0))
    partial_spec = pl.BlockSpec((1, 1, 1), lambda c, t: (c, 0, 0))

    logsum, sqsum = pl.pallas_call(
        kernel,
        out_shape=(jax.ShapeDtypeStruct((num_cores, 1, 1), jnp.float32),
                   jax.ShapeDtypeStruct((num_cores, 1, 1), jnp.float32)),
        grid_spec=pltpu.PrefetchScalarGridSpec(
            num_scalar_prefetch=0,
            grid=(num_cores, tiles_per_core),
            in_specs=[emb_spec, emb_spec, emb_spec],
            out_specs=[partial_spec, partial_spec],
            scratch_shapes=[pltpu.VMEM((tile_b, 1), jnp.float32),
                            pltpu.VMEM((tile_b, E), jnp.float32)],
        ),
        compiler_params=pltpu.CompilerParams(
            dimension_semantics=("parallel", "arbitrary"),
            vmem_limit_bytes=int(min(vmem_budget_bytes, 48 * 1024 * 1024)),
        ),
    )(u_e, pos_e, neg_e)

    bpr_loss = -(jnp.sum(logsum) / jnp.float32(B))
    reg_loss = jnp.float32(regs) * 0.5 * jnp.sum(sqsum)
    return bpr_loss, reg_loss


def xavier_uniform(key, shape):
    fan_out, fan_in = shape[0], shape[1]
    bound = jnp.sqrt(6.0 / (fan_in + fan_out))
    return jax.random.uniform(key, shape, jnp.float32, -bound, bound)


if __name__ == "__main__":
    n_users, n_items, embed_size = 512, 1024, 64
    regs = 1e-3
    B = 200  # deliberately not a multiple of the tile to exercise padding/masking

    key = jax.random.PRNGKey(0)
    k_u, k_i, k_user, k_pos, k_neg = jax.random.split(key, 5)

    user_embedding = xavier_uniform(k_u, (n_users, embed_size))
    item_embedding = xavier_uniform(k_i, (n_items, embed_size))

    user = jax.random.randint(k_user, (B,), 0, n_users, dtype=jnp.int32)
    pos = jax.random.randint(k_pos, (B,), 0, n_items, dtype=jnp.int32)
    neg = jax.random.randint(k_neg, (B,), 0, n_items, dtype=jnp.int32)

    bpr_loss, reg_loss = discriminator_forward(
        user_embedding, item_embedding, user, pos, neg, regs,
        tile_b=64, num_cores=2)
    jax.block_until_ready((bpr_loss, reg_loss))

    # Pure-JAX reference check (torch-literal formulation).
    u_e = user_embedding[user]
    pos_e = item_embedding[pos]
    neg_e = item_embedding[neg]
    pos_score = jnp.sum(pos_e * u_e, axis=1)
    neg_score = jnp.sum(neg_e * u_e, axis=1)
    bpr_ref = -jnp.mean(jnp.log(jax.nn.sigmoid(pos_score - neg_score)))
    reg_ref = regs * 0.5 * (jnp.sum(u_e ** 2) + jnp.sum(pos_e ** 2) + jnp.sum(neg_e ** 2))

    assert jnp.allclose(bpr_loss, bpr_ref, rtol=1e-4, atol=1e-5), (bpr_loss, bpr_ref)
    assert jnp.allclose(reg_loss, reg_ref, rtol=1e-4, atol=1e-5), (reg_loss, reg_ref)

    print("KERNEL_OK")
</pallas_src>

<mosaic_0001>
module attributes {stable_mosaic.version = 11 : i64} {
  func.func @_disc_kernel(%arg0: i32, %arg1: i32, %arg2: memref<64x64xf32, #tpu.memory_space<vmem>>, %arg3: memref<64x64xf32, #tpu.memory_space<vmem>>, %arg4: memref<64x64xf32, #tpu.memory_space<vmem>>, %arg5: memref<1x1x1xf32, #tpu.memory_space<vmem>>, %arg6: memref<1x1x1xf32, #tpu.memory_space<vmem>>, %arg7: memref<64x1xf32, #tpu.memory_space<vmem>>, %arg8: memref<64x64xf32, #tpu.memory_space<vmem>>) attributes {dimension_semantics = [#tpu.dimension_semantics<parallel>, #tpu.dimension_semantics<arbitrary>], iteration_bounds = array<i64: 2, 2>, scalar_prefetch = 0 : i64, scratch_operands = 2 : i64, tpu.core_type = #tpu.core_type<tc>, window_params = [{transform_indices = @transform_0, window_bounds = array<i64: 64, 64>}, {transform_indices = @transform_1, window_bounds = array<i64: 64, 64>}, {transform_indices = @transform_2, window_bounds = array<i64: 64, 64>}, {transform_indices = @transform_3, window_bounds = array<i64: 1, 1, 1>}, {transform_indices = @transform_4, window_bounds = array<i64: 1, 1, 1>}]} {
    %c0_i32 = arith.constant 0 : i32
    %0 = arith.cmpi eq, %arg1, %c0_i32 : i32
    %1 = arith.extui %0 : i1 to i32
    %c0_i32_0 = arith.constant 0 : i32
    %2 = arith.cmpi ne, %1, %c0_i32_0 : i32
    scf.if %2 {
      %cst_20 = arith.constant 0.000000e+00 : f32
      %47 = vector.broadcast %cst_20 : f32 to vector<64x1xf32>
      %c0_21 = arith.constant 0 : index
      %c0_22 = arith.constant 0 : index
      %48 = vector.load %arg7[%c0_21, %c0_22] : memref<64x1xf32, #tpu.memory_space<vmem>>, vector<64x1xf32>
      tpu.vector_store %arg7[%c0_21, %c0_22], %47 {strides = array<i32>} : memref<64x1xf32, #tpu.memory_space<vmem>>, vector<64x1xf32>,
      %cst_23 = arith.constant 0.000000e+00 : f32
      %49 = vector.broadcast %cst_23 : f32 to vector<64x64xf32>
      %c0_24 = arith.constant 0 : index
      %c0_25 = arith.constant 0 : index
      %50 = vector.load %arg8[%c0_24, %c0_25] : memref<64x64xf32, #tpu.memory_space<vmem>>, vector<64x64xf32>
      tpu.vector_store %arg8[%c0_24, %c0_25], %49 {strides = array<i32>} : memref<64x64xf32, #tpu.memory_space<vmem>>, vector<64x64xf32>,
    } else {
    }
    %c0 = arith.constant 0 : index
    %c0_1 = arith.constant 0 : index
    %3 = vector.load %arg2[%c0, %c0_1] : memref<64x64xf32, #tpu.memory_space<vmem>>, vector<64x64xf32>
    %c0_2 = arith.constant 0 : index
    %c0_3 = arith.constant 0 : index
    %4 = vector.load %arg3[%c0_2, %c0_3] : memref<64x64xf32, #tpu.memory_space<vmem>>, vector<64x64xf32>
    %c0_4 = arith.constant 0 : index
    %c0_5 = arith.constant 0 : index
    %5 = vector.load %arg4[%c0_4, %c0_5] : memref<64x64xf32, #tpu.memory_space<vmem>>, vector<64x64xf32>
    %6 = arith.mulf %4, %3 : vector<64x64xf32>
    %cst = arith.constant dense<0.000000e+00> : vector<64xf32>
    %7 = vector.multi_reduction <add>, %6, %cst [1] : vector<64x64xf32> to vector<64xf32>
    %8 = vector.shape_cast %7 : vector<64xf32> to vector<64x1xf32>
    %9 = arith.mulf %5, %3 : vector<64x64xf32>
    %cst_6 = arith.constant dense<0.000000e+00> : vector<64xf32>
    %10 = vector.multi_reduction <add>, %9, %cst_6 [1] : vector<64x64xf32> to vector<64xf32>
    %11 = vector.shape_cast %10 : vector<64xf32> to vector<64x1xf32>
    %12 = arith.subf %8, %11 : vector<64x1xf32>
    %cst_7 = arith.constant 0.000000e+00 : f32
    %13 = vector.broadcast %cst_7 : f32 to vector<64x1xf32>
    %14 = arith.minimumf %12, %13 : vector<64x1xf32>
    %15 = math.absf %12 : vector<64x1xf32>
    %cst_8 = arith.constant 0.000000e+00 : f32
    %16 = vector.broadcast %cst_8 : f32 to vector<64x1xf32>
    %17 = arith.subf %16, %15 : vector<64x1xf32>
    %18 = math.exp %17 : vector<64x1xf32>
    %cst_9 = arith.constant 1.000000e+00 : f32
    %19 = vector.broadcast %cst_9 : f32 to vector<64x1xf32>
    %20 = arith.addf %19, %18 : vector<64x1xf32>
    %21 = math.log %20 : vector<64x1xf32>
    %22 = arith.subf %14, %21 : vector<64x1xf32>
    %c2_i32 = arith.constant 2 : i32
    %23 = arith.muli %arg0, %c2_i32 : i32
    %24 = arith.addi %23, %arg1 : i32
    %c64_i32 = arith.constant 64 : i32
    %25 = arith.muli %24, %c64_i32 : i32
    %26 = tpu.iota {dimensions = array<i32: 0>} : vector<64x1xi32>
    %27 = vector.broadcast %25 : i32 to vector<64x1xi32>
    %28 = arith.addi %26, %27 : vector<64x1xi32>
    %c200_i32 = arith.constant 200 : i32
    %29 = vector.broadcast %c200_i32 : i32 to vector<64x1xi32>
    %30 = arith.cmpi slt, %28, %29 : vector<64x1xi32>
    %cst_10 = arith.constant 0.000000e+00 : f32
    %31 = vector.broadcast %cst_10 : f32 to vector<64x1xf32>
    %32 = arith.select %30, %22, %31 : vector<64x1xi1>, vector<64x1xf32>
    %c0_11 = arith.constant 0 : index
    %c0_12 = arith.constant 0 : index
    %33 = vector.load %arg7[%c0_11, %c0_12] : memref<64x1xf32, #tpu.memory_space<vmem>>, vector<64x1xf32>
    %34 = arith.addf %33, %32 : vector<64x1xf32>
    %c0_13 = arith.constant 0 : index
    %c0_14 = arith.constant 0 : index
    %35 = vector.load %arg7[%c0_13, %c0_14] : memref<64x1xf32, #tpu.memory_space<vmem>>, vector<64x1xf32>
    tpu.vector_store %arg7[%c0_13, %c0_14], %34 {strides = array<i32>} : memref<64x1xf32, #tpu.memory_space<vmem>>, vector<64x1xf32>,
    %c0_15 = arith.constant 0 : index
    %c0_16 = arith.constant 0 : index
    %36 = vector.load %arg8[%c0_15, %c0_16] : memref<64x64xf32, #tpu.memory_space<vmem>>, vector<64x64xf32>
    %37 = arith.mulf %3, %3 : vector<64x64xf32>
    %38 = arith.mulf %4, %4 : vector<64x64xf32>
    %39 = arith.addf %37, %38 : vector<64x64xf32>
    %40 = arith.mulf %5, %5 : vector<64x64xf32>
    %41 = arith.addf %39, %40 : vector<64x64xf32>
    %42 = arith.addf %36, %41 : vector<64x64xf32>
    %c0_17 = arith.constant 0 : index
    %c0_18 = arith.constant 0 : index
    %43 = vector.load %arg8[%c0_17, %c0_18] : memref<64x64xf32, #tpu.memory_space<vmem>>, vector<64x64xf32>
    tpu.vector_store %arg8[%c0_17, %c0_18], %42 {strides = array<i32>} : memref<64x64xf32, #tpu.memory_space<vmem>>, vector<64x64xf32>,
    %c1_i32 = arith.constant 1 : i32
    %44 = arith.cmpi eq, %arg1, %c1_i32 : i32
    %45 = arith.extui %44 : i1 to i32
    %c0_i32_19 = arith.constant 0 : i32
    %46 = arith.cmpi ne, %45, %c0_i32_19 : i32
    scf.if %46 {
      %c0_20 = arith.constant 0 : index
      %c0_21 = arith.constant 0 : index
      %47 = vector.load %arg7[%c0_20, %c0_21] : memref<64x1xf32, #tpu.memory_space<vmem>>, vector<64x1xf32>
      %48 = vector.shape_cast %47 : vector<64x1xf32> to vector<1x64x1xf32>
      %cst_22 = arith.constant dense<0.000000e+00> : vector<1xf32>
      %49 = vector.multi_reduction <add>, %48, %cst_22 [1, 2] : vector<1x64x1xf32> to vector<1xf32>
      %50 = vector.shape_cast %49 : vector<1xf32> to vector<1x1x1xf32>
      %51 = vector.extract %50[0, 0, 0] : f32 from vector<1x1x1xf32>
      %52 = vector.broadcast %51 : f32 to vector<1x1xf32>
      %53 = vector.shape_cast %52 : vector<1x1xf32> to vector<1x1x1xf32>
      %c0_23 = arith.constant 0 : index
      %c0_24 = arith.constant 0 : index
      %c0_25 = arith.constant 0 : index
      %54 = vector.load %arg5[%c0_23, %c0_24, %c0_25] : memref<1x1x1xf32, #tpu.memory_space<vmem>>, vector<1x1x1xf32>
      tpu.vector_store %arg5[%c0_23, %c0_24, %c0_25], %53 {strides = array<i32>} : memref<1x1x1xf32, #tpu.memory_space<vmem>>, vector<1x1x1xf32>,
      %c0_26 = arith.constant 0 : index
      %c0_27 = arith.constant 0 : index
      %55 = vector.load %arg8[%c0_26, %c0_27] : memref<64x64xf32, #tpu.memory_space<vmem>>, vector<64x64xf32>
      %56 = vector.shape_cast %55 : vector<64x64xf32> to vector<1x64x64xf32>
      %cst_28 = arith.constant dense<0.000000e+00> : vector<1xf32>
      %57 = vector.multi_reduction <add>, %56, %cst_28 [1, 2] : vector<1x64x64xf32> to vector<1xf32>
      %58 = vector.shape_cast %57 : vector<1xf32> to vector<1x1x1xf32>
      %59 = vector.extract %58[0, 0, 0] : f32 from vector<1x1x1xf32>
      %60 = vector.broadcast %59 : f32 to vector<1x1xf32>
      %61 = vector.shape_cast %60 : vector<1x1xf32> to vector<1x1x1xf32>
      %c0_29 = arith.constant 0 : index
      %c0_30 = arith.constant 0 : index
      %c0_31 = arith.constant 0 : index
      %62 = vector.load %arg6[%c0_29, %c0_30, %c0_31] : memref<1x1x1xf32, #tpu.memory_space<vmem>>, vector<1x1x1xf32>
      tpu.vector_store %arg6[%c0_29, %c0_30, %c0_31], %61 {strides = array<i32>} : memref<1x1x1xf32, #tpu.memory_space<vmem>>, vector<1x1x1xf32>,
    } else {
    }
    return
  }
  func.func @transform_0(%arg0: i32, %arg1: i32) -> (i32, i32) {
    %c2_i32 = arith.constant 2 : i32
    %0 = arith.muli %arg0, %c2_i32 : i32
    %1 = arith.addi %0, %arg1 : i32
    %c0_i32 = arith.constant 0 : i32
    %c0_i32_0 = arith.constant 0 : i32
    return %1, %c0_i32 : i32, i32
  }
  func.func @transform_1(%arg0: i32, %arg1: i32) -> (i32, i32) {
    %c2_i32 = arith.constant 2 : i32
    %0 = arith.muli %arg0, %c2_i32 : i32
    %1 = arith.addi %0, %arg1 : i32
    %c0_i32 = arith.constant 0 : i32
    %c0_i32_0 = arith.constant 0 : i32
    return %1, %c0_i32 : i32, i32
  }
  func.func @transform_2(%arg0: i32, %arg1: i32) -> (i32, i32) {
    %c2_i32 = arith.constant 2 : i32
    %0 = arith.muli %arg0, %c2_i32 : i32
    %1 = arith.addi %0, %arg1 : i32
    %c0_i32 = arith.constant 0 : i32
    %c0_i32_0 = arith.constant 0 : i32
    return %1, %c0_i32 : i32, i32
  }
  func.func @transform_3(%arg0: i32, %arg1: i32) -> (i32, i32, i32) {
    %c0_i32 = arith.constant 0 : i32
    %c0_i32_0 = arith.constant 0 : i32
    %c0_i32_1 = arith.constant 0 : i32
    return %arg0, %c0_i32, %c0_i32_0 : i32, i32, i32
  }
  func.func @transform_4(%arg0: i32, %arg1: i32) -> (i32, i32, i32) {
    %c0_i32 = arith.constant 0 : i32
    %c0_i32_0 = arith.constant 0 : i32
    %c0_i32_1 = arith.constant 0 : i32
    return %arg0, %c0_i32, %c0_i32_0 : i32, i32, i32
  }
}

</mosaic_0001>

<llo_original>
// kernel: tpu_custom_call.1
$region0: #{tpu_custom_call.1}
  #allocation0 [shape = 'u32[]', space=smem, size = 0x4, offset = 0x4, fixed_abs, tag = 'smem constant byte address 0x4 - core index']
  #allocation1 [shape = 'u32[72,128]{1,0:T(1,128)}', space=vmem, size = 0x9000, scoped, tag = 'internal scratch']
  #allocation2 [shape = 'f32[64,1]{1,0:T(8,128)}', space=vmem, size = 0x8000, scoped, tag = 'scratch operand']
  #allocation3 [shape = 'f32[64,64]{1,0:T(8,128)}', space=vmem, size = 0x8000, scoped, tag = 'scratch operand']
  %s0 = inlined_call_operand.vmem [shape: f32[256,64], index: 0, kind: input, shape index: {}]
  %s1 = inlined_call_operand.vmem [shape: f32[256,64], index: 1, kind: input, shape index: {}]
  %s2 = inlined_call_operand.vmem [shape: f32[256,64], index: 2, kind: input, shape index: {}]
  %s3 = inlined_call_operand.vmem [shape: f32[2,1,1], index: 3, kind: output, shape index: {0}]
  %s4 = inlined_call_operand.vmem [shape: f32[2,1,1], index: 4, kind: output, shape index: {1}]
  %5 = xla_tuple %s3, %s4
  %s6 = sld [smem:[#allocation0]]
  $region61: #{tpu_custom_call.1} parent=0
    _
  %s8 = ssub.s32 1, %s6
  %s9 = scalar_select 0, %s8, %s6
  loop: start=0, step=1, limit=6
  $region2: #{tpu_custom_call.1} parent=0 // loop_pre_header
    _
  $region3: #{tpu_custom_call.1} parent=0 // loop_header
    %s11 = sphi 0, %s15
    %p12 = scmp.ge.s32.totalorder %s11, 6
    %s18 = sphi 0, %s30
    %s19 = sphi 0, %s26
    %s20 = sphi 0, %s18
    %s21 = sphi 0, %s19
    %s22 = sphi 0, %s20
    %s23 = sphi 0, %s21
    %s37 = sphi 0, %s39
    %s40 = sphi 0, %s37
    %s41 = sphi 0, %s40
    %s57 = sphi 0, %s41
    %s67 = sphi 0, %s69
    %s70 = sphi 0, %s67
    %s71 = sphi 0, %s70
    %s87 = sphi 0, %s71
    %s97 = sphi 0, %s99
    %s100 = sphi 0, %s97
    %s101 = sphi 0, %s100
    %s117 = sphi 0, %s101
    %s123 = sphi 0, %s125
    %s126 = sphi 0, %s123
    %s127 = sphi 0, %s126
    %s143 = sphi 0, %s127
    %s149 = sphi 0, %s151
    %s152 = sphi 0, %s149
    %s153 = sphi 0, %s152
    %s169 = sphi 0, %s153
  $region4: #{tpu_custom_call.1} parent=0 // loop_header_branch
    %14 = sbr.rel (%p12) target = $region8
  $region5: #{tpu_custom_call.1} parent=0 // loop_body
    %s16 = ssub.s32 %s11, 1
    %s17 = ssub.s32 %s11, 2
    %s24 = sadd.s32 1, %s19
    %p25 = scmp.ge.s32.totalorder %s24, 2
    %s26 = scalar_select %p25, 0, %s24
    %s27 = sadd.s32 1, %s18
    %s28 = scalar_select %p25, %s27, %s18
    %p29 = scmp.ge.s32.totalorder %s28, 2
    %s30 = scalar_select %p29, 0, %s28
    %s31 = smul.u32 %s18, 2
    %s32 = sadd.s32 %s31, %s19
    %s33 = smul.u32 %s30, 2
    %s34 = sadd.s32 %s33, %s26
    %s35 = ssub.s32 %s32, %s34
    %p36 = scmp.eq.s32.totalorder %s35, 0
    %s38 = sadd.s32 %s37, 1
    %s39 = scalar_select %p36, %s37, %s38
    %p42 = pneg %p36
    %p43 = scmp.eq.s32.totalorder %s11, 3
    %p44 = por %p42, %p43
    %p45 = scmp.ne.s32.totalorder %s37, %s40
    %p46 = scmp.eq.s32.totalorder %s11, 0
    %p47 = por %p45, %p46
    %p48 = scmp.ne.s32.totalorder %s37, %s40
    %p49 = scmp.eq.s32.totalorder %s16, 3
    %p50 = por %p48, %p49
    %p51 = scmp.ne.s32.totalorder %s40, %s41
    %p52 = scmp.eq.s32.totalorder %s16, 0
    %p53 = por %p51, %p52
    %p54 = scmp.ne.s32.totalorder %s40, %s41
    %p55 = scmp.eq.s32.totalorder %s17, 3
    %p56 = por %p54, %p55
    %p58 = scmp.ne.s32.totalorder %s41, %s57
    %p59 = scmp.eq.s32.totalorder %s17, 0
    %p60 = por %p58, %p59
    %s61 = smul.u32 %s18, 2
    %s62 = sadd.s32 %s61, %s19
    %s63 = smul.u32 %s30, 2
    %s64 = sadd.s32 %s63, %s26
    %s65 = ssub.s32 %s62, %s64
    %p66 = scmp.eq.s32.totalorder %s65, 0
    %s68 = sadd.s32 %s67, 1
    %s69 = scalar_select %p66, %s67, %s68
    %p72 = pneg %p66
    %p73 = scmp.eq.s32.totalorder %s11, 3
    %p74 = por %p72, %p73
    %p75 = scmp.ne.s32.totalorder %s67, %s70
    %p76 = scmp.eq.s32.totalorder %s11, 0
    %p77 = por %p75, %p76
    %p78 = scmp.ne.s32.totalorder %s67, %s70
    %p79 = scmp.eq.s32.totalorder %s16, 3
    %p80 = por %p78, %p79
    %p81 = scmp.ne.s32.totalorder %s70, %s71
    %p82 = scmp.eq.s32.totalorder %s16, 0
    %p83 = por %p81, %p82
    %p84 = scmp.ne.s32.totalorder %s70, %s71
    %p85 = scmp.eq.s32.totalorder %s17, 3
    %p86 = por %p84, %p85
    %p88 = scmp.ne.s32.totalorder %s71, %s87
    %p89 = scmp.eq.s32.totalorder %s17, 0
    %p90 = por %p88, %p89
    %s91 = smul.u32 %s18, 2
    %s92 = sadd.s32 %s91, %s19
    %s93 = smul.u32 %s30, 2
    %s94 = sadd.s32 %s93, %s26
    %s95 = ssub.s32 %s92, %s94
    %p96 = scmp.eq.s32.totalorder %s95, 0
    %s98 = sadd.s32 %s97, 1
    %s99 = scalar_select %p96, %s97, %s98
    %p102 = pneg %p96
    %p103 = scmp.eq.s32.totalorder %s11, 3
    %p104 = por %p102, %p103
    %p105 = scmp.ne.s32.totalorder %s97, %s100
    %p106 = scmp.eq.s32.totalorder %s11, 0
    %p107 = por %p105, %p106
    %p108 = scmp.ne.s32.totalorder %s97, %s100
    %p109 = scmp.eq.s32.totalorder %s16, 3
    %p110 = por %p108, %p109
    %p111 = scmp.ne.s32.totalorder %s100, %s101
    %p112 = scmp.eq.s32.totalorder %s16, 0
    %p113 = por %p111, %p112
    %p114 = scmp.ne.s32.totalorder %s100, %s101
    %p115 = scmp.eq.s32.totalorder %s17, 3
    %p116 = por %p114, %p115
    %p118 = scmp.ne.s32.totalorder %s101, %s117
    %p119 = scmp.eq.s32.totalorder %s17, 0
    %p120 = por %p118, %p119
    %s121 = ssub.s32 %s18, %s30
    %p122 = scmp.eq.s32.totalorder %s121, 0
    %s124 = sadd.s32 %s123, 1
    %s125 = scalar_select %p122, %s123, %s124
    %p128 = pneg %p122
    %p129 = scmp.eq.s32.totalorder %s11, 3
    %p130 = por %p128, %p129
    %p131 = scmp.ne.s32.totalorder %s123, %s126
    %p132 = scmp.eq.s32.totalorder %s11, 0
    %p133 = por %p131, %p132
    %p134 = scmp.ne.s32.totalorder %s123, %s126
    %p135 = scmp.eq.s32.totalorder %s16, 3
    %p136 = por %p134, %p135
    %p137 = scmp.ne.s32.totalorder %s126, %s127
    %p138 = scmp.eq.s32.totalorder %s16, 0
    %p139 = por %p137, %p138
    %p140 = scmp.ne.s32.totalorder %s126, %s127
    %p141 = scmp.eq.s32.totalorder %s17, 3
    %p142 = por %p140, %p141
    %p144 = scmp.ne.s32.totalorder %s127, %s143
    %p145 = scmp.eq.s32.totalorder %s17, 0
    %p146 = por %p144, %p145
    %s147 = ssub.s32 %s18, %s30
    %p148 = scmp.eq.s32.totalorder %s147, 0
    %s150 = sadd.s32 %s149, 1
    %s151 = scalar_select %p148, %s149, %s150
    %p154 = pneg %p148
    %p155 = scmp.eq.s32.totalorder %s11, 3
    %p156 = por %p154, %p155
    %p157 = scmp.ne.s32.totalorder %s149, %s152
    %p158 = scmp.eq.s32.totalorder %s11, 0
    %p159 = por %p157, %p158
    %p160 = scmp.ne.s32.totalorder %s149, %s152
    %p161 = scmp.eq.s32.totalorder %s16, 3
    %p162 = por %p160, %p161
    %p163 = scmp.ne.s32.totalorder %s152, %s153
    %p164 = scmp.eq.s32.totalorder %s16, 0
    %p165 = por %p163, %p164
    %p166 = scmp.ne.s32.totalorder %s152, %s153
    %p167 = scmp.eq.s32.totalorder %s17, 3
    %p168 = por %p166, %p167
    %p170 = scmp.ne.s32.totalorder %s153, %s169
    %p171 = scmp.eq.s32.totalorder %s17, 0
    %p172 = por %p170, %p171
    %p173 = scmp.le.s32.totalorder 1, %s11
    %p174 = scmp.lt.s32.totalorder %s11, 5
    %p175 = pnand %p173, %p174
    %p176 = pneg %p175
    // Predicated region
    $region9: #{tpu_custom_call.1} parent=5 // pred_check
      _
    $region10: #{tpu_custom_call.1} parent=5 // pred_check_branch
      %178 = sbr.rel (%p175) target = $region12
    $region11: #{tpu_custom_call.1} parent=5 // pred_region
      %s179 = ssub.s32 %s11, 1
    $region12: #{tpu_custom_call.1} parent=5 // pred_fallthru
      _
    %p180 = scmp.lt.s32.totalorder %s11, 4
    // Predicated region
    $region13: #{tpu_custom_call.1} parent=5 // pred_check
      %p181 = pneg %p180
    $region14: #{tpu_custom_call.1} parent=5 // pred_check_branch
      %183 = sbr.rel (%p181) target = $region16
    $region15: #{tpu_custom_call.1} parent=5 // pred_region
      // Predicated region
      $region17: #{tpu_custom_call.1} parent=15 // pred_check
        %p184 = pneg %p47
      $region18: #{tpu_custom_call.1} parent=15 // pred_check_branch
        %186 = sbr.rel (%p184) target = $region20
      $region19: #{tpu_custom_call.1} parent=15 // pred_region
        %s187 = smul.u32 %s18, 2
        %s188 = sadd.s32 %s187, %s19
        %s189 = smul.u32 8, %s188
        %p190 = scmp.lt.s32.totalorder %s189, 31
        %s191 = scalar_select %p190, %s189, 31
        %s192 = smul.addr %s191, 8
        %s193 = scalar_lea.vmem %s0, %s192
        %s194 = smul.u32 %s18, 2
        %s195 = sadd.s32 %s194, %s19
        %s196 = smul.u32 8, %s195
      $region20: #{tpu_custom_call.1} parent=15 // pred_fallthru
        _
      // Predicated region
      $region21: #{tpu_custom_call.1} parent=15 // pred_check
        %p197 = pneg %p77
      $region22: #{tpu_custom_call.1} parent=15 // pred_check_branch
        %199 = sbr.rel (%p197) target = $region24
      $region23: #{tpu_custom_call.1} parent=15 // pred_region
        %s200 = smul.u32 %s18, 2
        %s201 = sadd.s32 %s200, %s19
        %s202 = smul.u32 8, %s201
        %p203 = scmp.lt.s32.totalorder %s202, 31
        %s204 = scalar_select %p203, %s202, 31
        %s205 = smul.addr %s204, 8
        %s206 = scalar_lea.vmem %s1, %s205
        %s207 = smul.u32 %s18, 2
        %s208 = sadd.s32 %s207, %s19
        %s209 = smul.u32 8, %s208
      $region24: #{tpu_custom_call.1} parent=15 // pred_fallthru
        _
      // Predicated region
      $region25: #{tpu_custom_call.1} parent=15 // pred_check
        %p210 = pneg %p107
      $region26: #{tpu_custom_call.1} parent=15 // pred_check_branch
        %212 = sbr.rel (%p210) target = $region28
      $region27: #{tpu_custom_call.1} parent=15 // pred_region
        %s213 = smul.u32 %s18, 2
        %s214 = sadd.s32 %s213, %s19
        %s215 = smul.u32 8, %s214
        %p216 = scmp.lt.s32.totalorder %s215, 31
        %s217 = scalar_select %p216, %s215, 31
        %s218 = smul.addr %s217, 8
        %s219 = scalar_lea.vmem %s2, %s218
        %s220 = smul.u32 %s18, 2
        %s221 = sadd.s32 %s220, %s19
        %s222 = smul.u32 8, %s221
      $region28: #{tpu_custom_call.1} parent=15 // pred_fallthru
        _
    $region16: #{tpu_custom_call.1} parent=5 // pred_fallthru
      _
    %p223 = scmp.le.s32.totalorder 1, %s11
    %p224 = scmp.lt.s32.totalorder %s11, 5
    %p225 = pnand %p223, %p224
    %p226 = pneg %p225
    // Predicated region
    $region29: #{tpu_custom_call.1} parent=5 // pred_check
      _
    $region30: #{tpu_custom_call.1} parent=5 // pred_check_branch
      %228 = sbr.rel (%p225) target = $region32
    $region31: #{tpu_custom_call.1} parent=5 // pred_region
      %s229 = ssub.s32 %s11, 1
      %s230 = smul.u32 %s20, 2
      %s231 = sadd.s32 %s230, %s21
      %s232 = smul.u32 8, %s231
      %p233 = scmp.lt.s32.totalorder %s232, 31
      %s234 = scalar_select %p233, %s232, 31
      %s235 = smul.addr %s234, 8
      %s236 = scalar_lea.vmem %s0, %s235
      %p237 = pneg %p53
      %p238 = pneg %p50
      %s239 = smul.u32 %s20, 2
      %s240 = sadd.s32 %s239, %s21
      %s241 = smul.u32 8, %s240
      %p242 = scmp.lt.s32.totalorder %s241, 31
      %s243 = scalar_select %p242, %s241, 31
      %s244 = smul.addr %s243, 8
      %s245 = scalar_lea.vmem %s1, %s244
      %p246 = pneg %p83
      %p247 = pneg %p80
      %s248 = smul.u32 %s20, 2
      %s249 = sadd.s32 %s248, %s21
      %s250 = smul.u32 8, %s249
      %p251 = scmp.lt.s32.totalorder %s250, 31
      %s252 = scalar_select %p251, %s250, 31
      %s253 = smul.addr %s252, 8
      %s254 = scalar_lea.vmem %s2, %s253
      %p255 = pneg %p113
      %p256 = pneg %p110
      %p257 = pneg %p139
      %p258 = pneg %p136
      %p259 = scmp.lt.s32.totalorder %s20, 1
      %s260 = scalar_select %p259, %s20, 1
      %s261 = scalar_lea.vmem %s3, %s260
      %p262 = pneg %p165
      %p263 = pneg %p162
      %p264 = scmp.lt.s32.totalorder %s20, 1
      %s265 = scalar_select %p264, %s20, 1
      %s266 = scalar_lea.vmem %s4, %s265
      %s267 = smul.u32 %s20, 2
      %s268 = sadd.s32 %s267, %s21
      %s269 = smul.u32 8, %s268
      %p270 = scmp.lt.s32.totalorder %s269, 31
      %s271 = scalar_select %p270, %s269, 31
      %s272 = smul.addr %s271, 8
      %s273 = scalar_lea.vmem %s0, %s272
      %s274 = smul.u32 %s20, 2
      %s275 = sadd.s32 %s274, %s21
      %s276 = smul.u32 8, %s275
      %s277 = smul.u32 %s20, 2
      %s278 = sadd.s32 %s277, %s21
      %s279 = smul.u32 8, %s278
      %p280 = scmp.lt.s32.totalorder %s279, 31
      %s281 = scalar_select %p280, %s279, 31
      %s282 = smul.addr %s281, 8
      %s283 = scalar_lea.vmem %s1, %s282
      %s284 = smul.u32 %s20, 2
      %s285 = sadd.s32 %s284, %s21
      %s286 = smul.u32 8, %s285
      %s287 = smul.u32 %s20, 2
      %s288 = sadd.s32 %s287, %s21
      %s289 = smul.u32 8, %s288
      %p290 = scmp.lt.s32.totalorder %s289, 31
      %s291 = scalar_select %p290, %s289, 31
      %s292 = smul.addr %s291, 8
      %s293 = scalar_lea.vmem %s2, %s292
      %s294 = smul.u32 %s20, 2
      %s295 = sadd.s32 %s294, %s21
      %s296 = smul.u32 8, %s295
      %p297 = scmp.lt.s32.totalorder %s20, 1
      %s298 = scalar_select %p297, %s20, 1
      %s299 = scalar_lea.vmem %s3, %s298
      %p300 = scmp.lt.s32.totalorder %s20, 1
      %s301 = scalar_select %p300, %s20, 1
      %s302 = scalar_lea.vmem %s4, %s301
      %p303 = scmp.eq.s32.totalorder %s21, 0
      // Predicated region
      $region33: #{tpu_custom_call.1} parent=31 // pred_check
        %p304 = pneg %p303
      $region34: #{tpu_custom_call.1} parent=31 // pred_check_branch
        %306 = sbr.rel (%p304) target = $region36
      $region35: #{tpu_custom_call.1} parent=31 // pred_region
        %vm307 = vcmask 7168
        %308 = vst.msk [vmem:[#allocation2] sm:$0xff] %vm307, 0.0
        %309 = vst.msk [vmem:[#allocation2 + $0x8] sm:$0xff] %vm307, 0.0
        %310 = vst.msk [vmem:[#allocation2 + $0x10] sm:$0xff] %vm307, 0.0
        %311 = vst.msk [vmem:[#allocation2 + $0x18] sm:$0xff] %vm307, 0.0
        %312 = vst.msk [vmem:[#allocation2 + $0x20] sm:$0xff] %vm307, 0.0
        %313 = vst.msk [vmem:[#allocation2 + $0x28] sm:$0xff] %vm307, 0.0
        %314 = vst.msk [vmem:[#allocation2 + $0x30] sm:$0xff] %vm307, 0.0
        %315 = vst.msk [vmem:[#allocation2 + $0x38] sm:$0xff] %vm307, 0.0
        %vm316 = vcmask 523264
        %317 = vst.msk [vmem:[#allocation3] sm:$0xff] %vm316, 0.0
        %318 = vst.msk [vmem:[#allocation3 + $0x8] sm:$0xff] %vm316, 0.0
        %319 = vst.msk [vmem:[#allocation3 + $0x10] sm:$0xff] %vm316, 0.0
        %320 = vst.msk [vmem:[#allocation3 + $0x18] sm:$0xff] %vm316, 0.0
        %321 = vst.msk [vmem:[#allocation3 + $0x20] sm:$0xff] %vm316, 0.0
        %322 = vst.msk [vmem:[#allocation3 + $0x28] sm:$0xff] %vm316, 0.0
        %323 = vst.msk [vmem:[#allocation3 + $0x30] sm:$0xff] %vm316, 0.0
        %324 = vst.msk [vmem:[#allocation3 + $0x38] sm:$0xff] %vm316, 0.0
      $region36: #{tpu_custom_call.1} parent=31 // pred_fallthru
        _
      %v325 = vld [vmem:[%s273] sm:$0xff]
      %v326 = vld [vmem:[%s273 + $0x8] sm:$0xff]
      %v327 = vld [vmem:[%s273 + $0x10] sm:$0xff]
      %v328 = vld [vmem:[%s273 + $0x18] sm:$0xff]
      %v329 = vld [vmem:[%s273 + $0x20] sm:$0xff]
      %v330 = vld [vmem:[%s273 + $0x28] sm:$0xff]
      %v331 = vld [vmem:[%s273 + $0x30] sm:$0xff]
      %v332 = vld [vmem:[%s273 + $0x38] sm:$0xff]
      %v333 = vld [vmem:[%s283] sm:$0xff]
      %v334 = vld [vmem:[%s283 + $0x8] sm:$0xff]
      %v335 = vld [vmem:[%s283 + $0x10] sm:$0xff]
      %v336 = vld [vmem:[%s283 + $0x18] sm:$0xff]
      %v337 = vld [vmem:[%s283 + $0x20] sm:$0xff]
      %v338 = vld [vmem:[%s283 + $0x28] sm:$0xff]
      %v339 = vld [vmem:[%s283 + $0x30] sm:$0xff]
      %v340 = vld [vmem:[%s283 + $0x38] sm:$0xff]
      %v341 = vld [vmem:[%s293] sm:$0xff]
      %v342 = vld [vmem:[%s293 + $0x8] sm:$0xff]
      %v343 = vld [vmem:[%s293 + $0x10] sm:$0xff]
      %v344 = vld [vmem:[%s293 + $0x18] sm:$0xff]
      %v345 = vld [vmem:[%s293 + $0x20] sm:$0xff]
      %v346 = vld [vmem:[%s293 + $0x28] sm:$0xff]
      %v347 = vld [vmem:[%s293 + $0x30] sm:$0xff]
      %v348 = vld [vmem:[%s293 + $0x38] sm:$0xff]
      %v349 = vmul.f32 %v333, %v325
      %v350 = vmul.f32 %v334, %v326
      %v351 = vmul.f32 %v335, %v327
      %v352 = vmul.f32 %v336, %v328
      %v353 = vmul.f32 %v337, %v329
      %v354 = vmul.f32 %v338, %v330
      %v355 = vmul.f32 %v339, %v331
      %v356 = vmul.f32 %v340, %v332
      %vm357 = vcmask 523264
      %v358 = vsel %vm357, %v349, 0.0
      %359 = vadd.xlane.f32.xlu0 %v358
      %v360 = vpop.xlane.xlu0 %359
      %v361 = vsel %vm357, %v350, 0.0
      %362 = vadd.xlane.f32.xlu0 %v361
      %v363 = vpop.xlane.xlu0 %362
      %v364 = vsel %vm357, %v351, 0.0
      %365 = vadd.xlane.f32.xlu0 %v364
      %v366 = vpop.xlane.xlu0 %365
      %v367 = vsel %vm357, %v352, 0.0
      %368 = vadd.xlane.f32.xlu0 %v367
      %v369 = vpop.xlane.xlu0 %368
      %v370 = vsel %vm357, %v353, 0.0
      %371 = vadd.xlane.f32.xlu0 %v370
      %v372 = vpop.xlane.xlu0 %371
      %v373 = vsel %vm357, %v354, 0.0
      %374 = vadd.xlane.f32.xlu0 %v373
      %v375 = vpop.xlane.xlu0 %374
      %v376 = vsel %vm357, %v355, 0.0
      %377 = vadd.xlane.f32.xlu0 %v376
      %v378 = vpop.xlane.xlu0 %377
      %v379 = vsel %vm357, %v356, 0.0
      %380 = vadd.xlane.f32.xlu0 %v379
      %v381 = vpop.xlane.xlu0 %380
      %v382 = vmul.f32 %v341, %v325
      %v383 = vmul.f32 %v342, %v326
      %v384 = vmul.f32 %v343, %v327
      %v385 = vmul.f32 %v344, %v328
      %v386 = vmul.f32 %v345, %v329
      %v387 = vmul.f32 %v346, %v330
      %v388 = vmul.f32 %v347, %v331
      %v389 = vmul.f32 %v348, %v332
      %v390 = vsel %vm357, %v382, 0.0
      %391 = vadd.xlane.f32.xlu0 %v390
      %v392 = vpop.xlane.xlu0 %391
      %v393 = vsel %vm357, %v383, 0.0
      %394 = vadd.xlane.f32.xlu0 %v393
      %v395 = vpop.xlane.xlu0 %394
      %v396 = vsel %vm357, %v384, 0.0
      %397 = vadd.xlane.f32.xlu0 %v396
      %v398 = vpop.xlane.xlu0 %397
      %v399 = vsel %vm357, %v385, 0.0
      %400 = vadd.xlane.f32.xlu0 %v399
      %v401 = vpop.xlane.xlu0 %400
      %v402 = vsel %vm357, %v386, 0.0
      %403 = vadd.xlane.f32.xlu0 %v402
      %v404 = vpop.xlane.xlu0 %403
      %v405 = vsel %vm357, %v387, 0.0
      %406 = vadd.xlane.f32.xlu0 %v405
      %v407 = vpop.xlane.xlu0 %406
      %v408 = vsel %vm357, %v388, 0.0
      %409 = vadd.xlane.f32.xlu0 %v408
      %v410 = vpop.xlane.xlu0 %409
      %v411 = vsel %vm357, %v389, 0.0
      %412 = vadd.xlane.f32.xlu0 %v411
      %v413 = vpop.xlane.xlu0 %412
      %v414 = vsub.f32 %v360, %v392
      %v415 = vsub.f32 %v363, %v395
      %v416 = vsub.f32 %v366, %v398
      %v417 = vsub.f32 %v369, %v401
      %v418 = vsub.f32 %v372, %v404
      %v419 = vsub.f32 %v375, %v407
      %v420 = vsub.f32 %v378, %v410
      %v421 = vsub.f32 %v381, %v413
      %v422 = vmin.f32 %v414, 0.0
      %v423 = vmin.f32 %v415, 0.0
      %v424 = vmin.f32 %v416, 0.0
      %v425 = vmin.f32 %v417, 0.0
      %v426 = vmin.f32 %v418, 0.0
      %v427 = vmin.f32 %v419, 0.0
      %v428 = vmin.f32 %v420, 0.0
      %v429 = vmin.f32 %v421, 0.0
      %v430 = vand.u32 2147483647, %v414
      %v431 = vand.u32 2147483647, %v415
      %v432 = vand.u32 2147483647, %v416
      %v433 = vand.u32 2147483647, %v417
      %v434 = vand.u32 2147483647, %v418
      %v435 = vand.u32 2147483647, %v419
      %v436 = vand.u32 2147483647, %v420
      %v437 = vand.u32 2147483647, %v421
      %v438 = vsub.f32 0.0, %v430
      %v439 = vsub.f32 0.0, %v431
      %v440 = vsub.f32 0.0, %v432
      %v441 = vsub.f32 0.0, %v433
      %v442 = vsub.f32 0.0, %v434
      %v443 = vsub.f32 0.0, %v435
      %v444 = vsub.f32 0.0, %v436
      %v445 = vsub.f32 0.0, %v437
      %v446 = vmul.f32 %v438, 1.442695
      %v447 = vpow.pop %v446
      %v448 = vmul.f32 %v439, 1.442695
      %v449 = vpow.pop %v448
      %v450 = vmul.f32 %v440, 1.442695
      %v451 = vpow.pop %v450
      %v452 = vmul.f32 %v441, 1.442695
      %v453 = vpow.pop %v452
      %v454 = vmul.f32 %v442, 1.442695
      %v455 = vpow.pop %v454
      %v456 = vmul.f32 %v443, 1.442695
      %v457 = vpow.pop %v456
      %v458 = vmul.f32 %v444, 1.442695
      %v459 = vpow.pop %v458
      %v460 = vmul.f32 %v445, 1.442695
      %v461 = vpow.pop %v460
      %v462 = vadd.f32 %v447, 1.0
      %v463 = vadd.f32 %v449, 1.0
      %v464 = vadd.f32 %v451, 1.0
      %v465 = vadd.f32 %v453, 1.0
      %v466 = vadd.f32 %v455, 1.0
      %v467 = vadd.f32 %v457, 1.0
      %v468 = vadd.f32 %v459, 1.0
      %v469 = vadd.f32 %v461, 1.0
      %v470 = vlog2.pop %v462
      %v471 = vmul.f32 %v470, 0.6931472
      %v472 = vlog2.pop %v463
      %v473 = vmul.f32 %v472, 0.6931472
      %v474 = vlog2.pop %v464
      %v475 = vmul.f32 %v474, 0.6931472
      %v476 = vlog2.pop %v465
      %v477 = vmul.f32 %v476, 0.6931472
      %v478 = vlog2.pop %v466
      %v479 = vmul.f32 %v478, 0.6931472
      %v480 = vlog2.pop %v467
      %v481 = vmul.f32 %v480, 0.6931472
      %v482 = vlog2.pop %v468
      %v483 = vmul.f32 %v482, 0.6931472
      %v484 = vlog2.pop %v469
      %v485 = vmul.f32 %v484, 0.6931472
      %v486 = vsub.f32 %v422, %v471
      %v487 = vsub.f32 %v423, %v473
      %v488 = vsub.f32 %v424, %v475
      %v489 = vsub.f32 %v425, %v477
      %v490 = vsub.f32 %v426, %v479
      %v491 = vsub.f32 %v427, %v481
      %v492 = vsub.f32 %v428, %v483
      %v493 = vsub.f32 %v429, %v485
      %s494 = smul.u32 %s20, 2
      %s495 = sadd.s32 %s494, %s21
      %s496 = smul.u32 %s495, 64
      %v497 = vlaneseq
      %v498 = vshrl.u32 %v497, 7
      %v499 = vadd.s32 %v498, 8
      %v500 = vadd.s32 %v498, 16
      %v501 = vadd.s32 %v498, 24
      %v502 = vadd.s32 %v498, 32
      %v503 = vadd.s32 %v498, 40
      %v504 = vadd.s32 %v498, 48
      %v505 = vadd.s32 %v498, 56
      %v506 = vstv %s496
      %v507 = vadd.s32 %v498, %v506
      %v508 = vadd.s32 %v499, %v506
      %v509 = vadd.s32 %v500, %v506
      %v510 = vadd.s32 %v501, %v506
      %v511 = vadd.s32 %v502, %v506
      %v512 = vadd.s32 %v503, %v506
      %v513 = vadd.s32 %v504, %v506
      %v514 = vadd.s32 %v505, %v506
      %vm515 = vcmp.lt.s32.totalorder %v507, 200
      %vm516 = vcmp.lt.s32.totalorder %v508, 200
      %vm517 = vcmp.lt.s32.totalorder %v509, 200
      %vm518 = vcmp.lt.s32.totalorder %v510, 200
      %vm519 = vcmp.lt.s32.totalorder %v511, 200
      %vm520 = vcmp.lt.s32.totalorder %v512, 200
      %vm521 = vcmp.lt.s32.totalorder %v513, 200
      %vm522 = vcmp.lt.s32.totalorder %v514, 200
      %v523 = vsel %vm515, %v486, 0.0
      %v524 = vsel %vm516, %v487, 0.0
      %v525 = vsel %vm517, %v488, 0.0
      %v526 = vsel %vm518, %v489, 0.0
      %v527 = vsel %vm519, %v490, 0.0
      %v528 = vsel %vm520, %v491, 0.0
      %v529 = vsel %vm521, %v492, 0.0
      %v530 = vsel %vm522, %v493, 0.0
      %v531 = vld [vmem:[#allocation2] sm:$0xff]
      %v532 = vld [vmem:[#allocation2 + $0x8] sm:$0xff]
      %v533 = vld [vmem:[#allocation2 + $0x10] sm:$0xff]
      %v534 = vld [vmem:[#allocation2 + $0x18] sm:$0xff]
      %v535 = vld [vmem:[#allocation2 + $0x20] sm:$0xff]
      %v536 = vld [vmem:[#allocation2 + $0x28] sm:$0xff]
      %v537 = vld [vmem:[#allocation2 + $0x30] sm:$0xff]
      %v538 = vld [vmem:[#allocation2 + $0x38] sm:$0xff]
      %v539 = vadd.f32 %v531, %v523
      %v540 = vadd.f32 %v532, %v524
      %v541 = vadd.f32 %v533, %v525
      %v542 = vadd.f32 %v534, %v526
      %v543 = vadd.f32 %v535, %v527
      %v544 = vadd.f32 %v536, %v528
      %v545 = vadd.f32 %v537, %v529
      %v546 = vadd.f32 %v538, %v530
      %vm547 = vcmask 7168
      %548 = vst.msk [vmem:[#allocation2] sm:$0xff] %vm547, %v539
      %549 = vst.msk [vmem:[#allocation2 + $0x8] sm:$0xff] %vm547, %v540
      %550 = vst.msk [vmem:[#allocation2 + $0x10] sm:$0xff] %vm547, %v541
      %551 = vst.msk [vmem:[#allocation2 + $0x18] sm:$0xff] %vm547, %v542
      %552 = vst.msk [vmem:[#allocation2 + $0x20] sm:$0xff] %vm547, %v543
      %553 = vst.msk [vmem:[#allocation2 + $0x28] sm:$0xff] %vm547, %v544
      %554 = vst.msk [vmem:[#allocation2 + $0x30] sm:$0xff] %vm547, %v545
      %555 = vst.msk [vmem:[#allocation2 + $0x38] sm:$0xff] %vm547, %v546
      %v556 = vld [vmem:[#allocation3] sm:$0xff]
      %v557 = vld [vmem:[#allocation3 + $0x8] sm:$0xff]
      %v558 = vld [vmem:[#allocation3 + $0x10] sm:$0xff]
      %v559 = vld [vmem:[#allocation3 + $0x18] sm:$0xff]
      %v560 = vld [vmem:[#allocation3 + $0x20] sm:$0xff]
      %v561 = vld [vmem:[#allocation3 + $0x28] sm:$0xff]
      %v562 = vld [vmem:[#allocation3 + $0x30] sm:$0xff]
      %v563 = vld [vmem:[#allocation3 + $0x38] sm:$0xff]
      %v564 = vmul.f32 %v325, %v325
      %v565 = vmul.f32 %v326, %v326
      %v566 = vmul.f32 %v327, %v327
      %v567 = vmul.f32 %v328, %v328
      %v568 = vmul.f32 %v329, %v329
      %v569 = vmul.f32 %v330, %v330
      %v570 = vmul.f32 %v331, %v331
      %v571 = vmul.f32 %v332, %v332
      %v572 = vmul.f32 %v333, %v333
      %v573 = vmul.f32 %v334, %v334
      %v574 = vmul.f32 %v335, %v335
      %v575 = vmul.f32 %v336, %v336
      %v576 = vmul.f32 %v337, %v337
      %v577 = vmul.f32 %v338, %v338
      %v578 = vmul.f32 %v339, %v339
      %v579 = vmul.f32 %v340, %v340
      %v580 = vadd.f32 %v564, %v572
      %v581 = vadd.f32 %v565, %v573
      %v582 = vadd.f32 %v566, %v574
      %v583 = vadd.f32 %v567, %v575
      %v584 = vadd.f32 %v568, %v576
      %v585 = vadd.f32 %v569, %v577
      %v586 = vadd.f32 %v570, %v578
      %v587 = vadd.f32 %v571, %v579
      %v588 = vmul.f32 %v341, %v341
      %v589 = vmul.f32 %v342, %v342
      %v590 = vmul.f32 %v343, %v343
      %v591 = vmul.f32 %v344, %v344
      %v592 = vmul.f32 %v345, %v345
      %v593 = vmul.f32 %v346, %v346
      %v594 = vmul.f32 %v347, %v347
      %v595 = vmul.f32 %v348, %v348
      %v596 = vadd.f32 %v580, %v588
      %v597 = vadd.f32 %v581, %v589
      %v598 = vadd.f32 %v582, %v590
      %v599 = vadd.f32 %v583, %v591
      %v600 = vadd.f32 %v584, %v592
      %v601 = vadd.f32 %v585, %v593
      %v602 = vadd.f32 %v586, %v594
      %v603 = vadd.f32 %v587, %v595
      %v604 = vadd.f32 %v556, %v596
      %v605 = vadd.f32 %v557, %v597
      %v606 = vadd.f32 %v558, %v598
      %v607 = vadd.f32 %v559, %v599
      %v608 = vadd.f32 %v560, %v600
      %v609 = vadd.f32 %v561, %v601
      %v610 = vadd.f32 %v562, %v602
      %v611 = vadd.f32 %v563, %v603
      %612 = vst.msk [vmem:[#allocation3] sm:$0xff] %vm357, %v604
      %613 = vst.msk [vmem:[#allocation3 + $0x8] sm:$0xff] %vm357, %v605
      %614 = vst.msk [vmem:[#allocation3 + $0x10] sm:$0xff] %vm357, %v606
      %615 = vst.msk [vmem:[#allocation3 + $0x18] sm:$0xff] %vm357, %v607
      %616 = vst.msk [vmem:[#allocation3 + $0x20] sm:$0xff] %vm357, %v608
      %617 = vst.msk [vmem:[#allocation3 + $0x28] sm:$0xff] %vm357, %v609
      %618 = vst.msk [vmem:[#allocation3 + $0x30] sm:$0xff] %vm357, %v610
      %619 = vst.msk [vmem:[#allocation3 + $0x38] sm:$0xff] %vm357, %v611
      %p620 = scmp.eq.s32.totalorder %s21, 1
      // Predicated region
      $region37: #{tpu_custom_call.1} parent=31 // pred_check
        %p621 = pneg %p620
      $region38: #{tpu_custom_call.1} parent=31 // pred_check_branch
        %623 = sbr.rel (%p621) target = $region40
      $region39: #{tpu_custom_call.1} parent=31 // pred_region
        %v624 = vld [vmem:[#allocation2] sm:$0xff]
        %v625 = vld [vmem:[#allocation2 + $0x8] sm:$0xff]
        %v626 = vld [vmem:[#allocation2 + $0x10] sm:$0xff]
        %v627 = vld [vmem:[#allocation2 + $0x18] sm:$0xff]
        %v628 = vld [vmem:[#allocation2 + $0x20] sm:$0xff]
        %v629 = vld [vmem:[#allocation2 + $0x28] sm:$0xff]
        %v630 = vld [vmem:[#allocation2 + $0x30] sm:$0xff]
        %v631 = vld [vmem:[#allocation2 + $0x38] sm:$0xff]
        %v632 = vsel %vm547, %v624, 0.0
        %v633 = vsel %vm547, %v625, 0.0
        %v634 = vadd.f32 %v632, %v633
        %v635 = vsel %vm547, %v626, 0.0
        %v636 = vadd.f32 %v634, %v635
        %v637 = vsel %vm547, %v627, 0.0
        %v638 = vadd.f32 %v636, %v637
        %v639 = vsel %vm547, %v628, 0.0
        %v640 = vadd.f32 %v638, %v639
        %v641 = vsel %vm547, %v629, 0.0
        %v642 = vadd.f32 %v640, %v641
        %v643 = vsel %vm547, %v630, 0.0
        %v644 = vadd.f32 %v642, %v643
        %v645 = vsel %vm547, %v631, 0.0
        %v646 = vadd.f32 %v644, %v645
        %647 = vadd.xlane.f32.xlu0 %v646
        %v648 = vpop.xlane.xlu0 %647
        %v649 = vrot.slane %v648, 4
        %v650 = vadd.f32 %v648, %v649
        %v651 = vrot.slane %v650, 2
        %v652 = vadd.f32 %v650, %v651
        %v653 = vrot.slane %v652, 1
        %v654 = vadd.f32 %v652, %v653
        %s655 = vtos %v654
        %v656 = vstv %s655
        %vm657 = vcmask 0
        %658 = vst.msk [vmem:[%s299] sm:$0x1] %vm657, %v656
        %v659 = vld [vmem:[#allocation3] sm:$0xff]
        %v660 = vld [vmem:[#allocation3 + $0x8] sm:$0xff]
        %v661 = vld [vmem:[#allocation3 + $0x10] sm:$0xff]
        %v662 = vld [vmem:[#allocation3 + $0x18] sm:$0xff]
        %v663 = vld [vmem:[#allocation3 + $0x20] sm:$0xff]
        %v664 = vld [vmem:[#allocation3 + $0x28] sm:$0xff]
        %v665 = vld [vmem:[#allocation3 + $0x30] sm:$0xff]
        %v666 = vld [vmem:[#allocation3 + $0x38] sm:$0xff]
        %v667 = vsel %vm357, %v659, 0.0
        %v668 = vsel %vm357, %v660, 0.0
        %v669 = vadd.f32 %v667, %v668
        %v670 = vsel %vm357, %v661, 0.0
        %v671 = vadd.f32 %v669, %v670
        %v672 = vsel %vm357, %v662, 0.0
        %v673 = vadd.f32 %v671, %v672
        %v674 = vsel %vm357, %v663, 0.0
        %v675 = vadd.f32 %v673, %v674
        %v676 = vsel %vm357, %v664, 0.0
        %v677 = vadd.f32 %v675, %v676
        %v678 = vsel %vm357, %v665, 0.0
        %v679 = vadd.f32 %v677, %v678
        %v680 = vsel %vm357, %v666, 0.0
        %v681 = vadd.f32 %v679, %v680
        %682 = vadd.xlane.f32.xlu0 %v681
        %v683 = vpop.xlane.xlu0 %682
        %v684 = vrot.slane %v683, 4
        %v685 = vadd.f32 %v683, %v684
        %v686 = vrot.slane %v685, 2
        %v687 = vadd.f32 %v685, %v686
        %v688 = vrot.slane %v687, 1
        %v689 = vadd.f32 %v687, %v688
        %s690 = vtos %v689
        %v691 = vstv %s690
        %692 = vst.msk [vmem:[%s302] sm:$0x1] %vm657, %v691
      $region40: #{tpu_custom_call.1} parent=31 // pred_fallthru
        _
      %p693 = scmp.lt.s32.totalorder %s20, 1
      %s694 = scalar_select %p693, %s20, 1
      %s695 = scalar_lea.vmem %s3, %s694
      %p696 = scmp.lt.s32.totalorder %s20, 1
      %s697 = scalar_select %p696, %s20, 1
      %s698 = scalar_lea.vmem %s4, %s697
      // Predicated region
      $region41: #{tpu_custom_call.1} parent=31 // pred_check
        %p699 = pneg %p136
      $region42: #{tpu_custom_call.1} parent=31 // pred_check_branch
        %701 = sbr.rel (%p699) target = $region44
      $region43: #{tpu_custom_call.1} parent=31 // pred_region
        _
      $region44: #{tpu_custom_call.1} parent=31 // pred_fallthru
        _
      // Predicated region
      $region45: #{tpu_custom_call.1} parent=31 // pred_check
        %p702 = pneg %p162
      $region46: #{tpu_custom_call.1} parent=31 // pred_check_branch
        %704 = sbr.rel (%p702) target = $region48
      $region47: #{tpu_custom_call.1} parent=31 // pred_region
        _
      $region48: #{tpu_custom_call.1} parent=31 // pred_fallthru
        _
    $region32: #{tpu_custom_call.1} parent=5 // pred_fallthru
      _
    %p705 = scmp.le.s32.totalorder 2, %s11
    // Predicated region
    $region49: #{tpu_custom_call.1} parent=5 // pred_check
      %p706 = pneg %p705
    $region50: #{tpu_custom_call.1} parent=5 // pred_check_branch
      %708 = sbr.rel (%p706) target = $region52
    $region51: #{tpu_custom_call.1} parent=5 // pred_region
      %s709 = ssub.s32 %s11, 2
      // Predicated region
      $region53: #{tpu_custom_call.1} parent=51 // pred_check
        %p710 = pneg %p142
      $region54: #{tpu_custom_call.1} parent=51 // pred_check_branch
        %712 = sbr.rel (%p710) target = $region56
      $region55: #{tpu_custom_call.1} parent=51 // pred_region
        %p713 = scmp.lt.s32.totalorder %s22, 1
        %s714 = scalar_select %p713, %s22, 1
        %s715 = scalar_lea.vmem %s3, %s714
      $region56: #{tpu_custom_call.1} parent=51 // pred_fallthru
        _
      // Predicated region
      $region57: #{tpu_custom_call.1} parent=51 // pred_check
        %p716 = pneg %p168
      $region58: #{tpu_custom_call.1} parent=51 // pred_check_branch
        %718 = sbr.rel (%p716) target = $region60
      $region59: #{tpu_custom_call.1} parent=51 // pred_region
        %p719 = scmp.lt.s32.totalorder %s22, 1
        %s720 = scalar_select %p719, %s22, 1
        %s721 = scalar_lea.vmem %s4, %s720
      $region60: #{tpu_custom_call.1} parent=51 // pred_fallthru
        _
    $region52: #{tpu_custom_call.1} parent=5 // pred_fallthru
      _
  $region6: #{tpu_custom_call.1} parent=0 // loop_footer
    %s15 = sadd.s32 1, %s11
  $region7: #{tpu_custom_call.1} parent=0 // loop_footer_branch
    %10 = sbr.rel target = $region3
  $region8: #{tpu_custom_call.1} parent=0 // loop_exit
    _

</llo_original>
